<compile_context>
chip_gen: v5e
topology: v5e:2x2
jax: 0.10.0
libtpu: 0.0.40
codegen_flags: <defaults>
</compile_context>

<pallas_src>
import functools

import jax
import jax.numpy as jnp
from jax import lax
from jax.experimental import pallas as pl
from jax.experimental.pallas import tpu as pltpu


def _round_up(x, mult):
    return (x + mult - 1) // mult * mult


def _vmem_budget():
    """(working-set budget, compiler vmem limit) scaled to this TPU's VMEM."""
    cap = 64 * 1024 * 1024  # conservative fallback (v7x per-core VMEM)
    try:
        info = pltpu.get_tpu_info()
        cap = int(getattr(info, "vmem_capacity_bytes", cap)) or cap
    except Exception:
        pass
    budget = int(cap * 0.70)   # ~90 MiB on v5e/v6e (128 MiB), ~45 MiB on v7x
    limit = int(cap * 0.85)
    return budget, limit


# -------------------- kernels --------------------

def _lm_head_kernel(x_ref, w_ref, o_ref, *, precision):
    # x_ref: (tm, H), w_ref: (tn, H)  [nn.Linear layout] -> o = x @ w.T
    o_ref[...] = lax.dot_general(
        x_ref[...], w_ref[...],
        dimension_numbers=(((1,), (1,)), ((), ())),
        preferred_element_type=jnp.float32,
        precision=precision,
    ).astype(o_ref.dtype)


def _lm_head_kernel_ktiled(x_ref, w_ref, o_ref, acc_ref, *, precision):
    # Fallback for hidden sizes too large to keep resident: accumulate over k.
    @pl.when(pl.program_id(2) == 0)
    def _init():
        acc_ref[...] = jnp.zeros_like(acc_ref)

    acc_ref[...] += lax.dot_general(
        x_ref[...], w_ref[...],
        dimension_numbers=(((1,), (1,)), ((), ())),
        preferred_element_type=jnp.float32,
        precision=precision,
    )

    @pl.when(pl.program_id(2) == pl.num_programs(2) - 1)
    def _finalize():
        o_ref[...] = acc_ref[...].astype(o_ref.dtype)


# -------------------- tile selection --------------------

def _select_tiles(m, v, h, x_b, w_b, o_b, budget):
    """Pick (tm, tn) for the K-resident matmul.  Returns (tm, tn, fits)."""
    m_align = 16 if x_b <= 2 else 8  # bf16/fp8 pack more sublanes per vreg

    def ws(tm_, tn_):
        # double-buffered x/w/out tiles + f32 dot intermediate headroom
        return (2 * tm_ * h * x_b
                + 2 * tn_ * h * w_b
                + 2 * tm_ * tn_ * o_b
                + tm_ * tn_ * 4)

    def clamp_m(t):
        return m if t >= m else max(m_align, (t // m_align) * m_align)

    def clamp_n(t):
        return v if t >= v else max(128, (t // 128) * 128)

    tm = clamp_m(1024)
    tn = clamp_n(512)

    if m <= 256:
        # Decode / small-M: purely weight-BW bound -> grow tn (bigger
        # contiguous (tn, H) weight DMAs, fewer grid steps).
        nxt = clamp_n(2 * tn)
        while tn < v and tn < 4096 and nxt != tn and ws(tm, nxt) <= budget:
            tn = nxt
            nxt = clamp_n(2 * tn)
    else:
        # Prefill: weight is re-streamed ceil(m/tm) times -> grow tm first.
        nxt = clamp_m(2 * tm)
        while tm < m and tm < 4096 and nxt != tm and ws(nxt, tn) <= budget:
            tm = nxt
            nxt = clamp_m(2 * tm)

    # Shrink to fit: tn down to a 256 floor first (keeps the 2x256-wide MXU
    # busy on v6e/v7x), then tm, then tn down to 128 as a last resort.
    while ws(tm, tn) > budget and tn > 256:
        tn = clamp_n(max(256, tn // 2))
    while ws(tm, tn) > budget and tm > m_align:
        tm = clamp_m(max(m_align, tm // 2))
    while ws(tm, tn) > budget and tn > 128:
        tn = clamp_n(max(128, tn // 2))

    return tm, tn, ws(tm, tn) <= budget


# -------------------- wrapper --------------------

def lm_pipe_layer_forward(hidden_states, weight, *, precision=None):
    """logits = F.linear(hidden_states, weight)  (no bias).

    hidden_states: (batch, seq, hidden); weight: (vocab, hidden).
    The weight is consumed directly in nn.Linear layout (no transpose/pad).
    """
    b, s, h = hidden_states.shape
    v, h_w = weight.shape
    assert h == h_w, "weight hidden dim mismatch"

    out_dtype = hidden_states.dtype
    m = b * s
    x2d = hidden_states.reshape(m, h)

    x_b = x2d.dtype.itemsize
    w_b = weight.dtype.itemsize
    o_b = jnp.dtype(out_dtype).itemsize

    budget, vmem_limit = _vmem_budget()
    tm, tn, k_resident = _select_tiles(m, v, h, x_b, w_b, o_b, budget)

    if k_resident:
        grid = (pl.cdiv(m, tm), pl.cdiv(v, tn))
        cost = pl.CostEstimate(
            flops=2 * m * v * h,
            transcendentals=0,
            bytes_accessed=(m * h * x_b              # x streamed once (resident across j)
                            + grid[0] * v * h * w_b  # weight streamed once per i block
                            + m * v * o_b),
        )
        out2d = pl.pallas_call(
            functools.partial(_lm_head_kernel, precision=precision),
            out_shape=jax.ShapeDtypeStruct((m, v), out_dtype),
            grid_spec=pltpu.PrefetchScalarGridSpec(
                num_scalar_prefetch=0,
                grid=grid,
                in_specs=[
                    pl.BlockSpec((tm, h), lambda i, j: (i, 0)),  # x tile, K resident
                    pl.BlockSpec((tn, h), lambda i, j: (j, 0)),  # weight tile, (vocab, hidden)
                ],
                out_specs=pl.BlockSpec((tm, tn), lambda i, j: (i, j)),
            ),
            compiler_params=pltpu.CompilerParams(
                # vocab axis "parallel": v7x megacore shards weight columns
                # across TensorCores instead of re-streaming the full weight.
                dimension_semantics=("arbitrary", "parallel"),
                vmem_limit_bytes=vmem_limit,
            ),
            cost_estimate=cost,
        )(x2d, weight)
        return out2d.reshape(b, s, v)

    # ---- fallback: hidden too large to keep resident -> tile K ----
    # TODO(synk): this path pads x/weight along hidden when h % tk != 0 (a full
    # weight copy); never hit for realistic Llama hidden sizes.
    m_align = 16 if x_b <= 2 else 8
    tm = m if m <= 256 else _round_up(256, m_align)
    tn = v if v <= 512 else 512

    def ws_k(tk_):
        return (2 * tm * tk_ * x_b + 2 * tk_ * tn * w_b
                + 2 * tm * tn * o_b + tm * tn * 4)

    tk = _round_up(h, 128)
    while tk > 128 and ws_k(tk) > budget:
        tk = max(128, ((tk // 2) // 128) * 128)
    h_pad = _round_up(h, tk)
    xk = x2d if h_pad == h else jnp.pad(x2d, ((0, 0), (0, h_pad - h)))
    wk = weight if h_pad == h else jnp.pad(weight, ((0, 0), (0, h_pad - h)))

    grid = (pl.cdiv(m, tm), pl.cdiv(v, tn), h_pad // tk)
    cost = pl.CostEstimate(
        flops=2 * m * v * h_pad,
        transcendentals=0,
        bytes_accessed=(m * h_pad * x_b
                        + grid[0] * v * h_pad * w_b
                        + m * v * o_b),
    )
    out2d = pl.pallas_call(
        functools.partial(_lm_head_kernel_ktiled, precision=precision),
        out_shape=jax.ShapeDtypeStruct((m, v), out_dtype),
        grid_spec=pltpu.PrefetchScalarGridSpec(
            num_scalar_prefetch=0,
            grid=grid,
            in_specs=[
                pl.BlockSpec((tm, tk), lambda i, j, k: (i, k)),
                pl.BlockSpec((tn, tk), lambda i, j, k: (j, k)),
            ],
            out_specs=pl.BlockSpec((tm, tn), lambda i, j, k: (i, j)),
            scratch_shapes=[pltpu.VMEM((tm, tn), jnp.float32)],
        ),
        compiler_params=pltpu.CompilerParams(
            dimension_semantics=("arbitrary", "parallel", "arbitrary"),
            vmem_limit_bytes=vmem_limit,
        ),
        cost_estimate=cost,
    )(xk, wk)
    return out2d.reshape(b, s, v)


# -------------------- self-test --------------------

if __name__ == "__main__":
    key = jax.random.PRNGKey(0)
    k_x, k_w, k_x2, k_w2, k_x3, k_w3 = jax.random.split(key, 6)

    # Case 1: small aligned config: batch=2, seq=8, hidden=128, vocab=256 (f32)
    batch, seq, hidden, vocab = 2, 8, 128, 256
    hs = jax.random.normal(k_x, (batch, seq, hidden), dtype=jnp.float32)
    w = (jax.random.normal(k_w, (vocab, hidden), dtype=jnp.float32)
         * (1.0 / jnp.sqrt(hidden)))
    logits = jax.block_until_ready(lm_pipe_layer_forward(hs, w))
    ref = jnp.einsum("bsh,vh->bsv", hs, w)
    assert logits.shape == (batch, seq, vocab)
    assert jnp.allclose(logits, ref, atol=1e-4, rtol=1e-4)

    # Case 2: non-divisible shapes (odd seq, vocab not a multiple of 128), f32
    batch2, seq2, hidden2, vocab2 = 2, 5, 128, 200
    hs2 = jax.random.normal(k_x2, (batch2, seq2, hidden2), dtype=jnp.float32)
    w2 = (jax.random.normal(k_w2, (vocab2, hidden2), dtype=jnp.float32)
          * (1.0 / jnp.sqrt(hidden2)))
    logits2 = jax.block_until_ready(lm_pipe_layer_forward(hs2, w2))
    ref2 = jnp.einsum("bsh,vh->bsv", hs2, w2)
    assert logits2.shape == (batch2, seq2, vocab2)
    assert jnp.allclose(logits2, ref2, atol=1e-4, rtol=1e-4)

    # Case 3: bf16 path (realistic lm_head dtype), batch=2, seq=8, vocab=384
    batch3, seq3, hidden3, vocab3 = 2, 8, 128, 384
    hs3 = jax.random.normal(k_x3, (batch3, seq3, hidden3)).astype(jnp.bfloat16)
    w3 = (jax.random.normal(k_w3, (vocab3, hidden3))
          * (1.0 / jnp.sqrt(hidden3))).astype(jnp.bfloat16)
    logits3 = jax.block_until_ready(lm_pipe_layer_forward(hs3, w3))
    ref3 = jnp.einsum("bsh,vh->bsv", hs3, w3).astype(jnp.float32)
    assert logits3.shape == (batch3, seq3, vocab3)
    assert jnp.allclose(logits3.astype(jnp.float32), ref3, atol=5e-2, rtol=5e-2)

    print("KERNEL_OK")
</pallas_src>

<mosaic_0001>
module attributes {stable_mosaic.version = 11 : i64} {
  func.func @_lm_head_kernel(%arg0: i32, %arg1: i32, %arg2: memref<16x128xf32, #tpu.memory_space<vmem>>, %arg3: memref<256x128xf32, #tpu.memory_space<vmem>>, %arg4: memref<16x256xf32, #tpu.memory_space<vmem>>) attributes {dimension_semantics = [#tpu.dimension_semantics<arbitrary>, #tpu.dimension_semantics<parallel>], iteration_bounds = array<i64: 1, 1>, scalar_prefetch = 0 : i64, scratch_operands = 0 : i64, tpu.core_type = #tpu.core_type<tc>, window_params = [{transform_indices = @transform_0, window_bounds = array<i64: 16, 128>}, {transform_indices = @transform_1, window_bounds = array<i64: 256, 128>}, {transform_indices = @transform_2, window_bounds = array<i64: 16, 256>}]} {
    %c0 = arith.constant 0 : index
    %c0_0 = arith.constant 0 : index
    %0 = vector.load %arg2[%c0, %c0_0] : memref<16x128xf32, #tpu.memory_space<vmem>>, vector<16x128xf32>
    %c0_1 = arith.constant 0 : index
    %c0_2 = arith.constant 0 : index
    %1 = vector.load %arg3[%c0_1, %c0_2] : memref<256x128xf32, #tpu.memory_space<vmem>>, vector<256x128xf32>
    %cst = arith.constant dense<0.000000e+00> : vector<16x256xf32>
    %2 = tpu.matmul %0, %1, %cst {dimension_numbers = #tpu.dot_dimension_numbers<[1], [1], [0], [0], [0, 0, 1, 0], [], []>} : vector<16x128xf32>, vector<256x128xf32>, vector<16x256xf32> -> vector<16x256xf32>
    %c0_3 = arith.constant 0 : index
    %c0_4 = arith.constant 0 : index
    %3 = vector.load %arg4[%c0_3, %c0_4] : memref<16x256xf32, #tpu.memory_space<vmem>>, vector<16x256xf32>
    tpu.vector_store %arg4[%c0_3, %c0_4], %2 {strides = array<i32>} : memref<16x256xf32, #tpu.memory_space<vmem>>, vector<16x256xf32>,
    return
  }
  func.func @transform_0(%arg0: i32, %arg1: i32) -> (i32, i32) {
    %c0_i32 = arith.constant 0 : i32
    %c0_i32_0 = arith.constant 0 : i32
    return %arg0, %c0_i32 : i32, i32
  }
  func.func @transform_1(%arg0: i32, %arg1: i32) -> (i32, i32) {
    %c0_i32 = arith.constant 0 : i32
    %c0_i32_0 = arith.constant 0 : i32
    return %arg1, %c0_i32 : i32, i32
  }
  func.func @transform_2(%arg0: i32, %arg1: i32) -> (i32, i32) {
    %c0_i32 = arith.constant 0 : i32
    return %arg0, %arg1 : i32, i32
  }
}

</mosaic_0001>

<llo_original>
// kernel: tpu_custom_call.1
$region0: #{tpu_custom_call.1}
  #allocation0 [shape = 'u32[]', space=smem, size = 0x4, offset = 0x4, fixed_abs, tag = 'smem constant byte address 0x4 - core index']
  #allocation1 [shape = 'u32[72,128]{1,0:T(1,128)}', space=vmem, size = 0x9000, scoped, tag = 'internal scratch']
  %s0 = inlined_call_operand.hbm [shape: f32[16,128], index: 0, kind: input, shape index: {}]
  %s1 = inlined_call_operand.hbm [shape: f32[256,128], index: 1, kind: input, shape index: {}]
  %s2 = inlined_call_operand.hbm [shape: f32[16,256], index: 2, kind: output, shape index: {}]
  %s3 = sld [smem:[#allocation0]]
  $region26: #{tpu_custom_call.1} parent=0
    _
  %s5 = ssub.s32 1, %s3
  %s6 = scalar_select 0, %s5, %s3
  $region1: #{tpu_custom_call.1} parent=0
    #allocation2 [shape = 'u8[8192]{0}', space=vmem, size = 0x2000, scoped, tag = 'input window, operand 0, single buffered']
    #allocation3 [shape = 's32[1]{0}', space=sflag, size = 0x4, scoped, tag = 'scoped memory for tpu_custom_call.1']
    #allocation4 [shape = 's32[1]{0}', space=sflag, size = 0x4, scoped, tag = 'scoped memory for tpu_custom_call.1']
    #allocation5 [shape = 'u8[131072]{0}', space=vmem, size = 0x20000, scoped, tag = 'input window, operand 1, single buffered']
    #allocation6 [shape = 's32[1]{0}', space=sflag, size = 0x4, scoped, tag = 'scoped memory for tpu_custom_call.1']
    #allocation7 [shape = 'u8[16384]{0}', space=vmem, size = 0x4000, scoped, tag = 'output window, operand 0, single buffered']
    %7 = vsyncpa [#allocation3], 0
    %8 = vsyncpa [#allocation6], 0
    %9 = vsyncpa [#allocation4], 0
    // Predicated region
    $region2: #{tpu_custom_call.1} parent=1 // pred_check
      _
    $region3: #{tpu_custom_call.1} parent=1 // pred_check_branch
      %11 = sbr.rel (0) target = $region5
    $region4: #{tpu_custom_call.1} parent=1 // pred_region
      %13 = vsyncadd [#allocation3], 0
      %s14 = sshll.u32 %s0, 4
      %s15 = int_to_ptr.hbm [resolvable:$true] %s14
      %s16 = sshll.u32 [#allocation2], 4
      %s17 = int_to_ptr.vmem [resolvable:$true] %s16
      %22 = dma.hbm_to_vmem [thread:$0]  %s15, 256, %s17, [#allocation3], 128, 128, 8
    $region5: #{tpu_custom_call.1} parent=1 // pred_fallthru
      _
    // Predicated region
    $region6: #{tpu_custom_call.1} parent=1 // pred_check
      _
    $region7: #{tpu_custom_call.1} parent=1 // pred_check_branch
      %24 = sbr.rel (0) target = $region9
    $region8: #{tpu_custom_call.1} parent=1 // pred_region
      %26 = vsyncadd [#allocation6], 0
      %s27 = sshll.u32 %s1, 4
      %s28 = int_to_ptr.hbm [resolvable:$true] %s27
      %s29 = sshll.u32 [#allocation5], 4
      %s30 = int_to_ptr.vmem [resolvable:$true] %s29
      %35 = dma.hbm_to_vmem [thread:$0]  %s28, 4096, %s30, [#allocation6], 128, 128, 8
    $region9: #{tpu_custom_call.1} parent=1 // pred_fallthru
      _
    // Predicated region
    $region10: #{tpu_custom_call.1} parent=1 // pred_check
      _
    $region11: #{tpu_custom_call.1} parent=1 // pred_check_branch
      %37 = sbr.rel (0) target = $region13
    $region12: #{tpu_custom_call.1} parent=1 // pred_region
      %39 = dma.done [#allocation3], 256
    $region13: #{tpu_custom_call.1} parent=1 // pred_fallthru
      _
    // Predicated region
    $region14: #{tpu_custom_call.1} parent=1 // pred_check
      _
    $region15: #{tpu_custom_call.1} parent=1 // pred_check_branch
      %41 = sbr.rel (0) target = $region17
    $region16: #{tpu_custom_call.1} parent=1 // pred_region
      %43 = dma.done [#allocation6], 4096
    $region17: #{tpu_custom_call.1} parent=1 // pred_fallthru
      _
    %v44 = vld [vmem:[#allocation2] sm:$0xff]
    %v45 = vld [vmem:[#allocation2 + $0x8] sm:$0xff]
    %v46 = vld [vmem:[#allocation5] sm:$0xff]
    %v47 = vld [vmem:[#allocation5 + $0x8] sm:$0xff]
    %v48 = vld [vmem:[#allocation5 + $0x10] sm:$0xff]
    %v49 = vld [vmem:[#allocation5 + $0x18] sm:$0xff]
    %v50 = vld [vmem:[#allocation5 + $0x20] sm:$0xff]
    %v51 = vld [vmem:[#allocation5 + $0x28] sm:$0xff]
    %v52 = vld [vmem:[#allocation5 + $0x30] sm:$0xff]
    %v53 = vld [vmem:[#allocation5 + $0x38] sm:$0xff]
    %v54 = vld [vmem:[#allocation5 + $0x40] sm:$0xff]
    %v55 = vld [vmem:[#allocation5 + $0x48] sm:$0xff]
    %v56 = vld [vmem:[#allocation5 + $0x50] sm:$0xff]
    %v57 = vld [vmem:[#allocation5 + $0x58] sm:$0xff]
    %v58 = vld [vmem:[#allocation5 + $0x60] sm:$0xff]
    %v59 = vld [vmem:[#allocation5 + $0x68] sm:$0xff]
    %v60 = vld [vmem:[#allocation5 + $0x70] sm:$0xff]
    %v61 = vld [vmem:[#allocation5 + $0x78] sm:$0xff]
    %v62 = vld [vmem:[#allocation5 + $0x80] sm:$0xff]
    %v63 = vld [vmem:[#allocation5 + $0x88] sm:$0xff]
    %v64 = vld [vmem:[#allocation5 + $0x90] sm:$0xff]
    %v65 = vld [vmem:[#allocation5 + $0x98] sm:$0xff]
    %v66 = vld [vmem:[#allocation5 + $0xa0] sm:$0xff]
    %v67 = vld [vmem:[#allocation5 + $0xa8] sm:$0xff]
    %v68 = vld [vmem:[#allocation5 + $0xb0] sm:$0xff]
    %v69 = vld [vmem:[#allocation5 + $0xb8] sm:$0xff]
    %v70 = vld [vmem:[#allocation5 + $0xc0] sm:$0xff]
    %v71 = vld [vmem:[#allocation5 + $0xc8] sm:$0xff]
    %v72 = vld [vmem:[#allocation5 + $0xd0] sm:$0xff]
    %v73 = vld [vmem:[#allocation5 + $0xd8] sm:$0xff]
    %v74 = vld [vmem:[#allocation5 + $0xe0] sm:$0xff]
    %v75 = vld [vmem:[#allocation5 + $0xe8] sm:$0xff]
    %v76 = vld [vmem:[#allocation5 + $0xf0] sm:$0xff]
    %v77 = vld [vmem:[#allocation5 + $0xf8] sm:$0xff]
    %78 = vmatpush.xpose.msra.mxu0 %v61
    %79 = vmatpush.xpose.msra.mxu0 %v60
    %80 = vmatpush.xpose.msra.mxu0 %v59
    %81 = vmatpush.xpose.msra.mxu0 %v58
    %82 = vmatpush.xpose.msra.mxu0 %v57
    %83 = vmatpush.xpose.msra.mxu0 %v56
    %84 = vmatpush.xpose.msra.mxu0 %v55
    %85 = vmatpush.xpose.msra.mxu0 %v54
    %86 = vmatpush.xpose.msra.mxu0 %v53
    %87 = vmatpush.xpose.msra.mxu0 %v52
    %88 = vmatpush.xpose.msra.mxu0 %v51
    %89 = vmatpush.xpose.msra.mxu0 %v50
    %90 = vmatpush.xpose.msra.mxu0 %v49
    %91 = vmatpush.xpose.msra.mxu0 %v48
    %92 = vmatpush.xpose.msra.mxu0 %v47
    %93 = vmatpush.xpose.msra.mxu0 %v46
    %94 = vmatmul.f32.gmra.mxu0 %v44
    %v95 = vpop.f32.mrf.mxu0
    %v96 = vadd.f32 0.0, %v95
    %97 = vmatmul.f32.gmra.mxu0 %v45
    %v98 = vpop.f32.mrf.mxu0
    %v99 = vadd.f32 0.0, %v98
    %100 = vdwg.mxu0
    %101 = vmatpush.xpose.msra.mxu0 %v77
    %102 = vmatpush.xpose.msra.mxu0 %v76
    %103 = vmatpush.xpose.msra.mxu0 %v75
    %104 = vmatpush.xpose.msra.mxu0 %v74
    %105 = vmatpush.xpose.msra.mxu0 %v73
    %106 = vmatpush.xpose.msra.mxu0 %v72
    %107 = vmatpush.xpose.msra.mxu0 %v71
    %108 = vmatpush.xpose.msra.mxu0 %v70
    %109 = vmatpush.xpose.msra.mxu0 %v69
    %110 = vmatpush.xpose.msra.mxu0 %v68
    %111 = vmatpush.xpose.msra.mxu0 %v67
    %112 = vmatpush.xpose.msra.mxu0 %v66
    %113 = vmatpush.xpose.msra.mxu0 %v65
    %114 = vmatpush.xpose.msra.mxu0 %v64
    %115 = vmatpush.xpose.msra.mxu0 %v63
    %116 = vmatpush.xpose.msra.mxu0 %v62
    %117 = vmatmul.f32.gmra.mxu0 %v44
    %v118 = vpop.f32.mrf.mxu0
    %v119 = vadd.f32 0.0, %v118
    %120 = vmatmul.f32.gmra.mxu0 %v45
    %v121 = vpop.f32.mrf.mxu0
    %v122 = vadd.f32 0.0, %v121
    %123 = vdwg.mxu0
    %124 = vst [vmem:[#allocation7] sm:$0xff] %v96
    %125 = vst [vmem:[#allocation7 + $0x8] sm:$0xff] %v119
    %126 = vst [vmem:[#allocation7 + $0x10] sm:$0xff] %v99
    %127 = vst [vmem:[#allocation7 + $0x18] sm:$0xff] %v122
    // Predicated region
    $region18: #{tpu_custom_call.1} parent=1 // pred_check
      _
    $region19: #{tpu_custom_call.1} parent=1 // pred_check_branch
      %129 = sbr.rel (0) target = $region21
    $region20: #{tpu_custom_call.1} parent=1 // pred_region
      %131 = vsyncadd [#allocation4], 0
      %s132 = sshll.u32 [#allocation7], 4
      %s133 = int_to_ptr.vmem [resolvable:$true] %s132
      %s134 = sshll.u32 %s2, 4
      %s135 = int_to_ptr.hbm [resolvable:$true] %s134
      %140 = dma.vmem_to_hbm [thread:$0]  %s133, 512, %s135, [#allocation4], 256, 256, 16
    $region21: #{tpu_custom_call.1} parent=1 // pred_fallthru
      _
    // Predicated region
    $region22: #{tpu_custom_call.1} parent=1 // pred_check
      _
    $region23: #{tpu_custom_call.1} parent=1 // pred_check_branch
      %142 = sbr.rel (0) target = $region25
    $region24: #{tpu_custom_call.1} parent=1 // pred_region
      %144 = dma.done [#allocation4], 512
    $region25: #{tpu_custom_call.1} parent=1 // pred_fallthru
      _
    %145 = vsyncpa [#allocation3], 1
    %146 = vsyncpa [#allocation6], 1
    %147 = vsyncpa [#allocation4], 1

</llo_original>
